<compile_context>
chip_gen: v6e
topology: v6e:2x2x1
jax: 0.10.0
libtpu: 0.0.40
codegen_flags: <defaults>
</compile_context>

<pallas_src>
import functools

import jax
import jax.numpy as jnp
from jax.experimental import pallas as pl
from jax.experimental.pallas import tpu as pltpu


def _round_up(x, m):
    return (x + m - 1) // m * m


def _disc_kernel(x_ref, w1_ref, b1_ref, w2_ref, b2_ref, o_ref, *,
                 compute_dtype, use_mxu_proj, approx_sigmoid):
    """One batch tile of: sigmoid(leaky_relu(x @ W1^T + b1) @ W2^T + b2).

    Layouts (batch mapped to lanes so the output store is lane-dense):
      x_ref : (TB, D)   input tile (streamed)
      w1_ref: (Fp, D)   first-layer weight, PyTorch (out, in) layout (resident)
      b1_ref: (Fp, 1)
      w2_ref: (Fp, 1)   second-layer weight as a column
      b2_ref: (1, 1)
      o_ref : (1, TB)   lane-dense output slab (batch on lanes)
    """
    x = x_ref[...]
    if compute_dtype is not None and x.dtype != compute_dtype:
        # Cast only the VMEM-resident tile (x stays f32 in HBM, no extra HBM pass).
        x = x.astype(compute_dtype)

    # First layer on the MXU. Contract the feature dim of BOTH operands
    # (q @ k.T form) so the result is (Fp, TB) with the batch already on lanes;
    # no transpose of the x tile is needed in-kernel or wrapper-side.
    h = jax.lax.dot_general(
        w1_ref[...], x,
        dimension_numbers=(((1,), (1,)), ((), ())),
        preferred_element_type=jnp.float32,
    )
    h = h + b1_ref[...]                      # (Fp, 1) broadcast across lanes
    h = jnp.where(h >= 0, h, 0.01 * h)       # LeakyReLU, PyTorch default slope 0.01

    if use_mxu_proj:
        # Large F: let the (now idle) MXU do the F-reduction; (Fp,1)x(Fp,TB)->(1,TB).
        y = jax.lax.dot_general(
            w2_ref[...], h,
            dimension_numbers=(((0,), (0,)), ((), ())),
            preferred_element_type=jnp.float32,
        ) + b2_ref[...]
    else:
        # Output width 1 with small F: VPU multiply + sublane reduction.
        y = jnp.sum(h * w2_ref[...], axis=0, keepdims=True) + b2_ref[...]   # (1, TB)

    # Sigmoid: exp runs on the EUP; reciprocal(approx=True) also lands on the EUP
    # slot but is opt-in since it deviates slightly from the exact sigmoid.
    o_ref[...] = pl.reciprocal(1.0 + jnp.exp(-y),
                               approx=approx_sigmoid).astype(o_ref.dtype)


def _choose_batch_tile(B, D, itemsize, *, target_bytes=2 * 1024 * 1024,
                       vmem_tile_budget=16 * 1024 * 1024):
    """Pick a 128-multiple batch tile that divides round_up(B, 128).

    Targets ~target_bytes of x streamed per grid step (>= 1024 rows), keeps the
    double-buffered x tile inside a VMEM budget, and keeps the grid >= 2 steps
    when possible so v7x's two TensorCores both get work.
    """
    Bp = _round_up(max(B, 1), 128)
    m = Bp // 128
    row_bytes = max(1, 128 * D * itemsize)
    want = max(8, target_bytes // row_bytes)                 # >= 1024 rows
    want = min(want, max(1, vmem_tile_budget // (2 * row_bytes)))
    if m >= 2:
        want = min(want, m // 2)                             # grid >= 2 for v7x megacore
    want = max(1, min(want, m))
    d = 1
    for cand in range(int(want), 0, -1):                     # largest divisor of m <= want
        if m % cand == 0:
            d = cand
            break
    return 128 * d, Bp


def discriminator_forward(x, w1, b1, w2, b2, *, batch_tile=None,
                          compute_dtype=None, approx_sigmoid=False):
    """Pallas TPU forward pass of the PyTorch Discriminator.

    Args:
      x : (B, D) float input.
      w1: (F, D) first Linear weight (PyTorch (out, in) layout).
      b1: (F,)   first Linear bias.
      w2: (1, F) or (F,) second Linear weight.
      b2: (1,)   second Linear bias.
      batch_tile: rows of x per grid step (multiple of 128). None -> auto
        (targets ~1-2 MB of x per step and keeps the grid >= 2 when possible).
      compute_dtype: if jnp.bfloat16, W1 is stored bf16 and the x tile is cast
        to bf16 inside the kernel (accumulation stays f32). x is NOT cast in HBM.
      approx_sigmoid: use the EUP approximate reciprocal in the sigmoid.

    Returns:
      (B, 1) float32 probabilities (matches the PyTorch module output).
    """
    B, D = x.shape
    F = w1.shape[0]
    assert w1.shape == (F, D)

    itemsize = jnp.dtype(x.dtype).itemsize
    if batch_tile is None:
        batch_tile, Bp = _choose_batch_tile(B, D, itemsize)
    else:
        assert batch_tile % 128 == 0, "batch_tile must be a multiple of 128"
        Bp = _round_up(B, batch_tile)

    # Feature-dim padding only (weights are tiny). bf16 packs two rows per
    # sublane, so round Fp to 16 in that case. Zero padding is exact: padded
    # feature rows have zero weight/bias/w2 and contribute nothing.
    f_mult = 16 if compute_dtype == jnp.bfloat16 else 8
    Fp = _round_up(F, f_mult)

    # x streams unmodified; pad only the batch dim, and only when needed
    # (<= 127 rows with the auto-chosen tile). No dtype cast pass over HBM.
    x_p = x if Bp == B else jnp.pad(x, ((0, Bp - B), (0, 0)))

    w1_dtype = compute_dtype if compute_dtype is not None else w1.dtype
    w1_p = jnp.pad(w1.astype(w1_dtype), ((0, Fp - F), (0, 0)))
    b1_p = jnp.pad(b1.astype(jnp.float32), (0, Fp - F)).reshape(Fp, 1)
    w2_p = jnp.pad(w2.reshape(-1).astype(jnp.float32), (0, Fp - F)).reshape(Fp, 1)
    b2_p = b2.reshape(1, 1).astype(jnp.float32)

    # VMEM budget: double-buffered x tile + resident W1 + output slab + vectors.
    # TODO(synk): for very large F*D (resident W1 > ~24 MiB) add a D-reduction
    # grid axis marked "arbitrary" with an f32 VMEM accumulator instead of
    # keeping W1 fully resident (matters on v7x's 64 MiB VMEM).
    w1_bytes = Fp * D * jnp.dtype(w1_dtype).itemsize
    x_tile_bytes = batch_tile * D * itemsize
    vmem_est = 2 * (x_tile_bytes + w1_bytes + batch_tile * 4) + 4 * Fp * 4 + (1 << 16)
    vmem_limit = int(min(max(32 * 1024 * 1024, 2 * vmem_est), 56 * 1024 * 1024))

    kernel = functools.partial(
        _disc_kernel,
        compute_dtype=compute_dtype,
        use_mxu_proj=(Fp >= 512),
        approx_sigmoid=approx_sigmoid,
    )

    grid = (Bp // batch_tile,)
    out = pl.pallas_call(
        kernel,
        out_shape=jax.ShapeDtypeStruct((1, Bp), jnp.float32),
        grid_spec=pltpu.PrefetchScalarGridSpec(
            num_scalar_prefetch=0,
            grid=grid,
            in_specs=[
                pl.BlockSpec((batch_tile, D), lambda i: (i, 0)),   # x tile (streamed)
                pl.BlockSpec((Fp, D), lambda i: (0, 0)),           # W1 (resident)
                pl.BlockSpec((Fp, 1), lambda i: (0, 0)),           # b1
                pl.BlockSpec((Fp, 1), lambda i: (0, 0)),           # w2 column
                pl.BlockSpec((1, 1), lambda i: (0, 0)),            # b2
            ],
            # Lane-dense output: one (1, batch_tile) slab per grid step.
            out_specs=pl.BlockSpec((1, batch_tile), lambda i: (0, i)),
        ),
        compiler_params=pltpu.CompilerParams(
            dimension_semantics=("parallel",),      # shards grid across TCs on v7x
            vmem_limit_bytes=vmem_limit,
        ),
    )(x_p, w1_p, b1_p, w2_p, b2_p)

    # Layout plumbing back to the PyTorch (B, 1) output shape.
    return out[0, :B].reshape(B, 1)


def init_params(key, input_dim, feature_dim):
    # PyTorch-style uniform init (+/- 1/sqrt(fan_in)), PyTorch (out, in) layout.
    k1, k2, k3, k4 = jax.random.split(key, 4)
    bound1 = 1.0 / jnp.sqrt(input_dim)
    bound2 = 1.0 / jnp.sqrt(feature_dim)
    w1 = jax.random.uniform(k1, (feature_dim, input_dim), jnp.float32, -bound1, bound1)
    b1 = jax.random.uniform(k2, (feature_dim,), jnp.float32, -bound1, bound1)
    w2 = jax.random.uniform(k3, (1, feature_dim), jnp.float32, -bound2, bound2)
    b2 = jax.random.uniform(k4, (1,), jnp.float32, -bound2, bound2)
    return w1, b1, w2, b2


if __name__ == "__main__":
    key = jax.random.PRNGKey(0)
    kx, kp = jax.random.split(key)

    batch = 16
    input_dim = 32
    feature_dim = 64

    x = jax.random.normal(kx, (batch, input_dim), dtype=jnp.float32)
    w1, b1, w2, b2 = init_params(kp, input_dim, feature_dim)

    # Exact sigmoid by default; pass approx_sigmoid=True / compute_dtype=bf16
    # on v6e/v7x for extra throughput when tolerances allow.
    out = discriminator_forward(x, w1, b1, w2, b2)
    out = jax.block_until_ready(out)
    assert out.shape == (batch, 1)

    # Pure-JAX reference (same math as the PyTorch module).
    h_ref = x @ w1.T + b1
    h_ref = jnp.where(h_ref >= 0, h_ref, 0.01 * h_ref)
    y_ref = jax.nn.sigmoid(h_ref @ w2.T + b2)

    assert jnp.allclose(out, y_ref, atol=1e-4, rtol=1e-4), "mismatch vs reference"

    print("KERNEL_OK")
</pallas_src>

<mosaic_0001>
module attributes {stable_mosaic.version = 11 : i64} {
  func.func @_disc_kernel(%arg0: i32, %arg1: memref<128x32xf32, #tpu.memory_space<vmem>>, %arg2: memref<64x32xf32, #tpu.memory_space<vmem>>, %arg3: memref<64x1xf32, #tpu.memory_space<vmem>>, %arg4: memref<64x1xf32, #tpu.memory_space<vmem>>, %arg5: memref<1x1xf32, #tpu.memory_space<vmem>>, %arg6: memref<1x128xf32, #tpu.memory_space<vmem>>) attributes {dimension_semantics = [#tpu.dimension_semantics<parallel>], iteration_bounds = array<i64: 1>, scalar_prefetch = 0 : i64, scratch_operands = 0 : i64, tpu.core_type = #tpu.core_type<tc>, window_params = [{transform_indices = @transform_0, window_bounds = array<i64: 128, 32>}, {pipeline_mode = #tpu.pipeline_mode<synchronous>, transform_indices = @transform_1, window_bounds = array<i64: 64, 32>}, {pipeline_mode = #tpu.pipeline_mode<synchronous>, transform_indices = @transform_2, window_bounds = array<i64: 64, 1>}, {pipeline_mode = #tpu.pipeline_mode<synchronous>, transform_indices = @transform_3, window_bounds = array<i64: 64, 1>}, {pipeline_mode = #tpu.pipeline_mode<synchronous>, transform_indices = @transform_4, window_bounds = array<i64: 1, 1>}, {transform_indices = @transform_5, window_bounds = array<i64: 1, 128>}]} {
    %c0 = arith.constant 0 : index
    %c0_0 = arith.constant 0 : index
    %0 = vector.load %arg1[%c0, %c0_0] : memref<128x32xf32, #tpu.memory_space<vmem>>, vector<128x32xf32>
    %c0_1 = arith.constant 0 : index
    %c0_2 = arith.constant 0 : index
    %1 = vector.load %arg2[%c0_1, %c0_2] : memref<64x32xf32, #tpu.memory_space<vmem>>, vector<64x32xf32>
    %cst = arith.constant dense<0.000000e+00> : vector<64x128xf32>
    %2 = tpu.matmul %1, %0, %cst {dimension_numbers = #tpu.dot_dimension_numbers<[1], [1], [0], [0], [0, 0, 1, 0], [], []>} : vector<64x32xf32>, vector<128x32xf32>, vector<64x128xf32> -> vector<64x128xf32>
    %c0_3 = arith.constant 0 : index
    %c0_4 = arith.constant 0 : index
    %3 = vector.load %arg3[%c0_3, %c0_4] : memref<64x1xf32, #tpu.memory_space<vmem>>, vector<64x1xf32>
    %4 = vector.broadcast %3 : vector<64x1xf32> to vector<64x128xf32>
    %5 = arith.addf %2, %4 : vector<64x128xf32>
    %cst_5 = arith.constant 0.000000e+00 : f32
    %6 = vector.broadcast %cst_5 : f32 to vector<64x128xf32>
    %7 = arith.cmpf oge, %5, %6 : vector<64x128xf32>
    %cst_6 = arith.constant 0.00999999977 : f32
    %8 = vector.broadcast %cst_6 : f32 to vector<64x128xf32>
    %9 = arith.mulf %8, %5 : vector<64x128xf32>
    %10 = arith.select %7, %5, %9 : vector<64x128xi1>, vector<64x128xf32>
    %c0_7 = arith.constant 0 : index
    %c0_8 = arith.constant 0 : index
    %11 = vector.load %arg4[%c0_7, %c0_8] : memref<64x1xf32, #tpu.memory_space<vmem>>, vector<64x1xf32>
    %12 = vector.broadcast %11 : vector<64x1xf32> to vector<64x128xf32>
    %13 = arith.mulf %10, %12 : vector<64x128xf32>
    %cst_9 = arith.constant dense<0.000000e+00> : vector<128xf32>
    %14 = vector.multi_reduction <add>, %13, %cst_9 [0] : vector<64x128xf32> to vector<128xf32>
    %15 = vector.shape_cast %14 : vector<128xf32> to vector<1x128xf32>
    %c0_10 = arith.constant 0 : index
    %c0_11 = arith.constant 0 : index
    %16 = vector.load %arg5[%c0_10, %c0_11] : memref<1x1xf32, #tpu.memory_space<vmem>>, vector<1x1xf32>
    %17 = vector.broadcast %16 : vector<1x1xf32> to vector<1x128xf32>
    %18 = arith.addf %15, %17 : vector<1x128xf32>
    %cst_12 = arith.constant 0.000000e+00 : f32
    %19 = vector.broadcast %cst_12 : f32 to vector<1x128xf32>
    %20 = arith.subf %19, %18 : vector<1x128xf32>
    %21 = math.exp %20 : vector<1x128xf32>
    %cst_13 = arith.constant 1.000000e+00 : f32
    %22 = vector.broadcast %cst_13 : f32 to vector<1x128xf32>
    %23 = arith.addf %22, %21 : vector<1x128xf32>
    %24 = tpu.reciprocal %23 : vector<1x128xf32> -> vector<1x128xf32>
    %c0_14 = arith.constant 0 : index
    %c0_15 = arith.constant 0 : index
    %25 = vector.load %arg6[%c0_14, %c0_15] : memref<1x128xf32, #tpu.memory_space<vmem>>, vector<1x128xf32>
    tpu.vector_store %arg6[%c0_14, %c0_15], %24 {strides = array<i32>} : memref<1x128xf32, #tpu.memory_space<vmem>>, vector<1x128xf32>,
    return
  }
  func.func @transform_0(%arg0: i32) -> (i32, i32) {
    %c0_i32 = arith.constant 0 : i32
    %c0_i32_0 = arith.constant 0 : i32
    return %arg0, %c0_i32 : i32, i32
  }
  func.func @transform_1(%arg0: i32) -> (i32, i32) {
    %c0_i32 = arith.constant 0 : i32
    %c0_i32_0 = arith.constant 0 : i32
    %c0_i32_1 = arith.constant 0 : i32
    return %c0_i32, %c0_i32_0 : i32, i32
  }
  func.func @transform_2(%arg0: i32) -> (i32, i32) {
    %c0_i32 = arith.constant 0 : i32
    %c0_i32_0 = arith.constant 0 : i32
    %c0_i32_1 = arith.constant 0 : i32
    return %c0_i32, %c0_i32_0 : i32, i32
  }
  func.func @transform_3(%arg0: i32) -> (i32, i32) {
    %c0_i32 = arith.constant 0 : i32
    %c0_i32_0 = arith.constant 0 : i32
    %c0_i32_1 = arith.constant 0 : i32
    return %c0_i32, %c0_i32_0 : i32, i32
  }
  func.func @transform_4(%arg0: i32) -> (i32, i32) {
    %c0_i32 = arith.constant 0 : i32
    %c0_i32_0 = arith.constant 0 : i32
    %c0_i32_1 = arith.constant 0 : i32
    return %c0_i32, %c0_i32_0 : i32, i32
  }
  func.func @transform_5(%arg0: i32) -> (i32, i32) {
    %c0_i32 = arith.constant 0 : i32
    %c0_i32_0 = arith.constant 0 : i32
    return %c0_i32, %arg0 : i32, i32
  }
}

</mosaic_0001>

<llo_original>
// kernel: tpu_custom_call.1
$region0: #{tpu_custom_call.1}
  #allocation0 [shape = 'u32[]', space=smem, size = 0x4, offset = 0x4, fixed_abs, tag = 'smem constant byte address 0x4 - core index']
  #allocation1 [shape = 'u32[144,128]{1,0:T(1,128)}', space=vmem, size = 0x12000, scoped, tag = 'internal scratch']
  #allocation2 [shape = 'f32[1,1]{1,0:T(1,128)S(1)}', space=vmem, size = 0x200, scoped, tag = 'scoped memory for tpu_custom_call.1']
  %s0 = inlined_call_operand.vmem [shape: f32[128,32], index: 0, kind: input, shape index: {}]
  %s1 = inlined_call_operand.vmem [shape: f32[64,32], index: 1, kind: input, shape index: {}]
  %s2 = inlined_call_operand.vmem [shape: f32[64,1], index: 2, kind: input, shape index: {}]
  %s3 = inlined_call_operand.vmem [shape: f32[64,1], index: 3, kind: input, shape index: {}]
  %s4 = inlined_call_operand.<no memory space> [shape: f32[1,1], index: 4, kind: input, shape index: {}]
  %s5 = inlined_call_operand.hbm [shape: f32[1,128], index: 5, kind: output, shape index: {}]
  %s6 = sld [smem:[#allocation0]]
  $region30: #{tpu_custom_call.1} parent=0
    _
  %s8 = ssub.s32 1, %s6
  %s9 = scalar_select 0, %s8, %s6
  %v10 = vstv %s4
  %11 = vst [vmem:[#allocation2] sm:$0x1] %v10
  $region1: #{tpu_custom_call.1} parent=0
    #allocation3 [shape = 'u8[512]{0}', space=vmem, size = 0x400, scoped, tag = 'output window, operand 0, single buffered']
    #allocation4 [shape = 's32[1]{0}', space=sflag, size = 0x4, scoped, tag = 'scoped memory for tpu_custom_call.1']
    %12 = vsyncpa [#allocation4], 0
    // Predicated region
    $region2: #{tpu_custom_call.1} parent=1 // pred_check
      _
    $region3: #{tpu_custom_call.1} parent=1 // pred_check_branch
      %14 = sbr.rel (0) target = $region5
    $region4: #{tpu_custom_call.1} parent=1 // pred_region
      _
    $region5: #{tpu_custom_call.1} parent=1 // pred_fallthru
      _
    // Predicated region
    $region6: #{tpu_custom_call.1} parent=1 // pred_check
      _
    $region7: #{tpu_custom_call.1} parent=1 // pred_check_branch
      %16 = sbr.rel (0) target = $region9
    $region8: #{tpu_custom_call.1} parent=1 // pred_region
      _
    $region9: #{tpu_custom_call.1} parent=1 // pred_fallthru
      _
    // Predicated region
    $region10: #{tpu_custom_call.1} parent=1 // pred_check
      _
    $region11: #{tpu_custom_call.1} parent=1 // pred_check_branch
      %18 = sbr.rel (0) target = $region13
    $region12: #{tpu_custom_call.1} parent=1 // pred_region
      _
    $region13: #{tpu_custom_call.1} parent=1 // pred_fallthru
      _
    // Predicated region
    $region14: #{tpu_custom_call.1} parent=1 // pred_check
      _
    $region15: #{tpu_custom_call.1} parent=1 // pred_check_branch
      %20 = sbr.rel (0) target = $region17
    $region16: #{tpu_custom_call.1} parent=1 // pred_region
      _
    $region17: #{tpu_custom_call.1} parent=1 // pred_fallthru
      _
    // Predicated region
    $region18: #{tpu_custom_call.1} parent=1 // pred_check
      _
    $region19: #{tpu_custom_call.1} parent=1 // pred_check_branch
      %22 = sbr.rel (0) target = $region21
    $region20: #{tpu_custom_call.1} parent=1 // pred_region
      _
    $region21: #{tpu_custom_call.1} parent=1 // pred_fallthru
      _
    %v23 = vld [vmem:[%s0] sm:$0xff]
    %v24 = vld [vmem:[%s0 + $0x8] sm:$0xff]
    %v25 = vld [vmem:[%s0 + $0x10] sm:$0xff]
    %v26 = vld [vmem:[%s0 + $0x18] sm:$0xff]
    %v27 = vld [vmem:[%s0 + $0x20] sm:$0xff]
    %v28 = vld [vmem:[%s0 + $0x28] sm:$0xff]
    %v29 = vld [vmem:[%s0 + $0x30] sm:$0xff]
    %v30 = vld [vmem:[%s0 + $0x38] sm:$0xff]
    %v31 = vld [vmem:[%s0 + $0x40] sm:$0xff]
    %v32 = vld [vmem:[%s0 + $0x48] sm:$0xff]
    %v33 = vld [vmem:[%s0 + $0x50] sm:$0xff]
    %v34 = vld [vmem:[%s0 + $0x58] sm:$0xff]
    %v35 = vld [vmem:[%s0 + $0x60] sm:$0xff]
    %v36 = vld [vmem:[%s0 + $0x68] sm:$0xff]
    %v37 = vld [vmem:[%s0 + $0x70] sm:$0xff]
    %v38 = vld [vmem:[%s0 + $0x78] sm:$0xff]
    %v39 = vld [vmem:[%s1] sm:$0xff]
    %v40 = vld [vmem:[%s1 + $0x8] sm:$0xff]
    %v41 = vld [vmem:[%s1 + $0x10] sm:$0xff]
    %v42 = vld [vmem:[%s1 + $0x18] sm:$0xff]
    %v43 = vld [vmem:[%s1 + $0x20] sm:$0xff]
    %v44 = vld [vmem:[%s1 + $0x28] sm:$0xff]
    %v45 = vld [vmem:[%s1 + $0x30] sm:$0xff]
    %v46 = vld [vmem:[%s1 + $0x38] sm:$0xff]
    %v47 = vld [vmem:[%s2] sm:$0xff]
    %v48 = vld [vmem:[%s2 + $0x8] sm:$0xff]
    %v49 = vld [vmem:[%s2 + $0x10] sm:$0xff]
    %v50 = vld [vmem:[%s2 + $0x18] sm:$0xff]
    %v51 = vld [vmem:[%s2 + $0x20] sm:$0xff]
    %v52 = vld [vmem:[%s2 + $0x28] sm:$0xff]
    %v53 = vld [vmem:[%s2 + $0x30] sm:$0xff]
    %v54 = vld [vmem:[%s2 + $0x38] sm:$0xff]
    %56 = vset.pattern.permute.xlu0 0
    %57 = vperm.xlu0 %56, %v47
    %v58 = vpop.permute.xlu0 %57
    %61 = vset.pattern.permute.xlu0 0
    %62 = vperm.xlu0 %61, %v48
    %v63 = vpop.permute.xlu0 %62
    %66 = vset.pattern.permute.xlu0 0
    %67 = vperm.xlu0 %66, %v49
    %v68 = vpop.permute.xlu0 %67
    %71 = vset.pattern.permute.xlu0 0
    %72 = vperm.xlu0 %71, %v50
    %v73 = vpop.permute.xlu0 %72
    %76 = vset.pattern.permute.xlu0 0
    %77 = vperm.xlu0 %76, %v51
    %v78 = vpop.permute.xlu0 %77
    %81 = vset.pattern.permute.xlu0 0
    %82 = vperm.xlu0 %81, %v52
    %v83 = vpop.permute.xlu0 %82
    %86 = vset.pattern.permute.xlu0 0
    %87 = vperm.xlu0 %86, %v53
    %v88 = vpop.permute.xlu0 %87
    %91 = vset.pattern.permute.xlu0 0
    %92 = vperm.xlu0 %91, %v54
    %v93 = vpop.permute.xlu0 %92
    %vm95 = vcmask 261120
    %v97 = vsel %vm95, %v39, 0
    %v100 = vsel %vm95, %v40, 0
    %v103 = vsel %vm95, %v41, 0
    %v106 = vsel %vm95, %v42, 0
    %v109 = vsel %vm95, %v43, 0
    %v112 = vsel %vm95, %v44, 0
    %v115 = vsel %vm95, %v45, 0
    %v118 = vsel %vm95, %v46, 0
    %v121 = vsel %vm95, %v23, 0
    %v124 = vsel %vm95, %v24, 0
    %v127 = vsel %vm95, %v25, 0
    %v130 = vsel %vm95, %v26, 0
    %v133 = vsel %vm95, %v27, 0
    %v136 = vsel %vm95, %v28, 0
    %v139 = vsel %vm95, %v29, 0
    %v142 = vsel %vm95, %v30, 0
    %v145 = vsel %vm95, %v31, 0
    %v148 = vsel %vm95, %v32, 0
    %v151 = vsel %vm95, %v33, 0
    %v154 = vsel %vm95, %v34, 0
    %v157 = vsel %vm95, %v35, 0
    %v160 = vsel %vm95, %v36, 0
    %v163 = vsel %vm95, %v37, 0
    %v166 = vsel %vm95, %v38, 0
    %168 = vmatprep.subr.mxu0 0.0
    %169 = vmatpush1.xpose.msra.mxu0 %v166
    %170 = vmatprep.subr.mxu0 0.0
    %171 = vmatpush1.xpose.msra.mxu0 %v163
    %172 = vmatprep.subr.mxu0 0.0
    %173 = vmatpush1.xpose.msra.mxu0 %v160
    %174 = vmatprep.subr.mxu0 0.0
    %175 = vmatpush1.xpose.msra.mxu0 %v157
    %176 = vmatprep.subr.mxu0 0.0
    %177 = vmatpush1.xpose.msra.mxu0 %v154
    %178 = vmatprep.subr.mxu0 0.0
    %179 = vmatpush1.xpose.msra.mxu0 %v151
    %180 = vmatprep.subr.mxu0 0.0
    %181 = vmatpush1.xpose.msra.mxu0 %v148
    %182 = vmatprep.subr.mxu0 0.0
    %183 = vmatpush1.xpose.msra.mxu0 %v145
    %184 = vmatprep.subr.mxu0 0.0
    %185 = vmatpush1.xpose.msra.mxu0 %v142
    %186 = vmatprep.subr.mxu0 0.0
    %187 = vmatpush1.xpose.msra.mxu0 %v139
    %188 = vmatprep.subr.mxu0 0.0
    %189 = vmatpush1.xpose.msra.mxu0 %v136
    %190 = vmatprep.subr.mxu0 0.0
    %191 = vmatpush1.xpose.msra.mxu0 %v133
    %192 = vmatprep.subr.mxu0 0.0
    %193 = vmatpush1.xpose.msra.mxu0 %v130
    %194 = vmatprep.subr.mxu0 0.0
    %195 = vmatpush1.xpose.msra.mxu0 %v127
    %196 = vmatprep.subr.mxu0 0.0
    %197 = vmatpush1.xpose.msra.mxu0 %v124
    %198 = vmatprep.subr.mxu0 0.0
    %199 = vmatpush1.xpose.msra.mxu0 %v121
    %200 = vmatprep.subr.mxu0 0.0
    %201 = vmatpush2.xpose.msra.mxu0 0.0
    %202 = vmatprep.subr.mxu0 0.0
    %203 = vmatpush2.xpose.msra.mxu0 0.0
    %204 = vmatprep.subr.mxu0 0.0
    %205 = vmatpush2.xpose.msra.mxu0 0.0
    %206 = vmatprep.subr.mxu0 0.0
    %207 = vmatpush2.xpose.msra.mxu0 0.0
    %208 = vmatprep.subr.mxu0 0.0
    %209 = vmatpush2.xpose.msra.mxu0 0.0
    %210 = vmatprep.subr.mxu0 0.0
    %211 = vmatpush2.xpose.msra.mxu0 0.0
    %212 = vmatprep.subr.mxu0 0.0
    %213 = vmatpush2.xpose.msra.mxu0 0.0
    %214 = vmatprep.subr.mxu0 0.0
    %215 = vmatpush2.xpose.msra.mxu0 0.0
    %216 = vmatprep.subr.mxu0 0.0
    %217 = vmatpush2.xpose.msra.mxu0 0.0
    %218 = vmatprep.subr.mxu0 0.0
    %219 = vmatpush2.xpose.msra.mxu0 0.0
    %220 = vmatprep.subr.mxu0 0.0
    %221 = vmatpush2.xpose.msra.mxu0 0.0
    %222 = vmatprep.subr.mxu0 0.0
    %223 = vmatpush2.xpose.msra.mxu0 0.0
    %224 = vmatprep.subr.mxu0 0.0
    %225 = vmatpush2.xpose.msra.mxu0 0.0
    %226 = vmatprep.subr.mxu0 0.0
    %227 = vmatpush2.xpose.msra.mxu0 0.0
    %228 = vmatprep.subr.mxu0 0.0
    %229 = vmatpush2.xpose.msra.mxu0 0.0
    %230 = vmatprep.subr.mxu0 0.0
    %231 = vmatpush2.xpose.msra.mxu0 0.0
    %232 = vmatprep.mubr.f32.mxu0 0.0
    %233 = vmatmul.mubr.f32.gmra.mxu0 %v97
    %v234 = vpop.f32.mrf.mxu0
    %v235 = vadd.f32 %v58, %v234
    %v236 = vpop.f32.mrf.mxu0
    %237 = vmatprep.mubr.f32.mxu0 0.0
    %238 = vmatmul.mubr.f32.gmra.mxu0 %v100
    %v239 = vpop.f32.mrf.mxu0
    %v240 = vadd.f32 %v63, %v239
    %v241 = vpop.f32.mrf.mxu0
    %242 = vmatprep.mubr.f32.mxu0 0.0
    %243 = vmatmul.mubr.f32.gmra.mxu0 %v103
    %v244 = vpop.f32.mrf.mxu0
    %v245 = vadd.f32 %v68, %v244
    %v246 = vpop.f32.mrf.mxu0
    %247 = vmatprep.mubr.f32.mxu0 0.0
    %248 = vmatmul.mubr.f32.gmra.mxu0 %v106
    %v249 = vpop.f32.mrf.mxu0
    %v250 = vadd.f32 %v73, %v249
    %v251 = vpop.f32.mrf.mxu0
    %252 = vmatprep.mubr.f32.mxu0 0.0
    %253 = vmatmul.mubr.f32.gmra.mxu0 %v109
    %v254 = vpop.f32.mrf.mxu0
    %v255 = vadd.f32 %v78, %v254
    %v256 = vpop.f32.mrf.mxu0
    %257 = vmatprep.mubr.f32.mxu0 0.0
    %258 = vmatmul.mubr.f32.gmra.mxu0 %v112
    %v259 = vpop.f32.mrf.mxu0
    %v260 = vadd.f32 %v83, %v259
    %v261 = vpop.f32.mrf.mxu0
    %262 = vmatprep.mubr.f32.mxu0 0.0
    %263 = vmatmul.mubr.f32.gmra.mxu0 %v115
    %v264 = vpop.f32.mrf.mxu0
    %v265 = vadd.f32 %v88, %v264
    %v266 = vpop.f32.mrf.mxu0
    %267 = vmatprep.mubr.f32.mxu0 0.0
    %268 = vmatmul.mubr.f32.gmra.mxu0 %v118
    %v269 = vpop.f32.mrf.mxu0
    %v270 = vadd.f32 %v93, %v269
    %v271 = vpop.f32.mrf.mxu0
    %272 = vdwg.mxu0
    %vm273 = vcmp.ge.f32.partialorder %v235, 0.0
    %vm274 = vcmp.ge.f32.partialorder %v240, 0.0
    %vm275 = vcmp.ge.f32.partialorder %v245, 0.0
    %vm276 = vcmp.ge.f32.partialorder %v250, 0.0
    %vm277 = vcmp.ge.f32.partialorder %v255, 0.0
    %vm278 = vcmp.ge.f32.partialorder %v260, 0.0
    %vm279 = vcmp.ge.f32.partialorder %v265, 0.0
    %vm280 = vcmp.ge.f32.partialorder %v270, 0.0
    %v281 = vmul.f32 %v235, 0.01
    %v282 = vmul.f32 %v240, 0.01
    %v283 = vmul.f32 %v245, 0.01
    %v284 = vmul.f32 %v250, 0.01
    %v285 = vmul.f32 %v255, 0.01
    %v286 = vmul.f32 %v260, 0.01
    %v287 = vmul.f32 %v265, 0.01
    %v288 = vmul.f32 %v270, 0.01
    %v289 = vsel %vm273, %v235, %v281
    %v290 = vsel %vm274, %v240, %v282
    %v291 = vsel %vm275, %v245, %v283
    %v292 = vsel %vm276, %v250, %v284
    %v293 = vsel %vm277, %v255, %v285
    %v294 = vsel %vm278, %v260, %v286
    %v295 = vsel %vm279, %v265, %v287
    %v296 = vsel %vm280, %v270, %v288
    %v297 = vld [vmem:[%s3] sm:$0xff]
    %v298 = vld [vmem:[%s3 + $0x8] sm:$0xff]
    %v299 = vld [vmem:[%s3 + $0x10] sm:$0xff]
    %v300 = vld [vmem:[%s3 + $0x18] sm:$0xff]
    %v301 = vld [vmem:[%s3 + $0x20] sm:$0xff]
    %v302 = vld [vmem:[%s3 + $0x28] sm:$0xff]
    %v303 = vld [vmem:[%s3 + $0x30] sm:$0xff]
    %v304 = vld [vmem:[%s3 + $0x38] sm:$0xff]
    %306 = vset.pattern.permute.xlu0 0
    %307 = vperm.xlu0 %306, %v297
    %v308 = vpop.permute.xlu0 %307
    %311 = vset.pattern.permute.xlu0 0
    %312 = vperm.xlu0 %311, %v298
    %v313 = vpop.permute.xlu0 %312
    %316 = vset.pattern.permute.xlu0 0
    %317 = vperm.xlu0 %316, %v299
    %v318 = vpop.permute.xlu0 %317
    %321 = vset.pattern.permute.xlu0 0
    %322 = vperm.xlu0 %321, %v300
    %v323 = vpop.permute.xlu0 %322
    %326 = vset.pattern.permute.xlu0 0
    %327 = vperm.xlu0 %326, %v301
    %v328 = vpop.permute.xlu0 %327
    %331 = vset.pattern.permute.xlu0 0
    %332 = vperm.xlu0 %331, %v302
    %v333 = vpop.permute.xlu0 %332
    %336 = vset.pattern.permute.xlu0 0
    %337 = vperm.xlu0 %336, %v303
    %v338 = vpop.permute.xlu0 %337
    %341 = vset.pattern.permute.xlu0 0
    %342 = vperm.xlu0 %341, %v304
    %v343 = vpop.permute.xlu0 %342
    %v345 = vmul.f32 %v289, %v308
    %v346 = vmul.f32 %v290, %v313
    %v347 = vmul.f32 %v291, %v318
    %v348 = vmul.f32 %v292, %v323
    %v349 = vmul.f32 %v293, %v328
    %v350 = vmul.f32 %v294, %v333
    %v351 = vmul.f32 %v295, %v338
    %v352 = vmul.f32 %v296, %v343
    %v353 = vadd.f32 %v345, %v346
    %v354 = vadd.f32 %v353, %v347
    %v355 = vadd.f32 %v354, %v348
    %v356 = vadd.f32 %v355, %v349
    %v357 = vadd.f32 %v356, %v350
    %v358 = vadd.f32 %v357, %v351
    %v359 = vadd.f32 %v358, %v352
    %v360 = vrot.slane %v359, 4
    %v361 = vadd.f32 %v359, %v360
    %v362 = vrot.slane %v361, 2
    %v363 = vadd.f32 %v361, %v362
    %v364 = vrot.slane %v363, 1
    %v365 = vadd.f32 %v363, %v364
    %v366 = vld [vmem:[#allocation2] sm:$0x1]
    %368 = vset.pattern.permute.xlu0 0
    %369 = vperm.xlu0 %368, %v366
    %v370 = vpop.permute.xlu0 %369
    %v372 = vlaneseq
    %v373 = vshrl.u32 %v372, 7
    %v374 = vsub.s32 0, %v373
    %v375 = vrot.slane %v370, %v374
    %v376 = vadd.f32 %v365, %v375
    %v377 = vsub.f32 0.0, %v376
    %v378 = vmul.f32 %v377, 1.442695
    %v379 = vpow.pop %v378
    %v380 = vadd.f32 %v379, 1.0
    %v381 = vrcp.pop %v380
    %382 = vst [vmem:[#allocation3] sm:$0x1] %v381
    // Predicated region
    $region22: #{tpu_custom_call.1} parent=1 // pred_check
      _
    $region23: #{tpu_custom_call.1} parent=1 // pred_check_branch
      %384 = sbr.rel (0) target = $region25
    $region24: #{tpu_custom_call.1} parent=1 // pred_region
      %s386 = ssub.s32 16, 16
      %387 = vsyncadd [#allocation4], %s386
      %s389 = sshll.u32 [#allocation3], 4
      %s390 = int_to_ptr.vmem [resolvable:$true] %s389
      %392 = dma.vmem_to_hbm [thread:$0]  %s390, 16, %s5, [#allocation4]
    $region25: #{tpu_custom_call.1} parent=1 // pred_fallthru
      _
    // Predicated region
    $region26: #{tpu_custom_call.1} parent=1 // pred_check
      _
    $region27: #{tpu_custom_call.1} parent=1 // pred_check_branch
      %394 = sbr.rel (0) target = $region29
    $region28: #{tpu_custom_call.1} parent=1 // pred_region
      %395 = dma.done [#allocation4], 16
    $region29: #{tpu_custom_call.1} parent=1 // pred_fallthru
      _
    %396 = vsyncpa [#allocation4], 1

</llo_original>
